<compile_context>
chip_gen: v5e
topology: v5e:2x2
jax: 0.10.0
libtpu: 0.0.40
codegen_flags: <defaults>
</compile_context>

<pallas_src>
import functools

import jax
import jax.numpy as jnp
from jax import lax
from jax.experimental import pallas as pl
from jax.experimental.pallas import tpu as pltpu


def _round_up(x, m):
    return ((x + m - 1) // m) * m


def _chip_config():
    """TPU-generation gating: int8 MXU availability, 2-TC sharding, VMEM."""
    kind = ""
    try:
        kind = jax.devices()[0].device_kind.lower()
    except Exception:
        pass
    is_v7 = "v7" in kind
    has_int_mxu = ("v5" in kind) or ("v6" in kind)   # integer MXU generations
    return {
        "has_int_mxu": has_int_mxu,
        "two_cores": is_v7,                          # v7x: 2 TensorCores/chip
        "vmem_budget": (24 << 20) if is_v7 else (48 << 20),
        "vmem_cap": (32 << 20) if is_v7 else (64 << 20),
    }


# ----------------------------- Pallas kernels ------------------------------ #
def _pcilt_kernel_noacc(scale_ref, a_ref, w_ref, bias_ref, o_ref, *, acc_dtype):
    # Single-K-step fast path: no resident accumulator.
    acc = jnp.dot(a_ref[...], w_ref[...], preferred_element_type=acc_dtype)
    o_ref[...] = acc.astype(jnp.float32) * scale_ref[0, 0] + bias_ref[...]


def _pcilt_kernel_acc(scale_ref, a_ref, w_ref, bias_ref, o_ref, acc_ref, *,
                      acc_dtype):
    # General path: resident accumulator (int32 for int8 operands, f32 for bf16)
    # across the K ("arbitrary") grid axis.
    del acc_dtype  # accumulator dtype is carried by acc_ref's scratch dtype
    k = pl.program_id(2)

    @pl.when(k == 0)
    def _():
        acc_ref[...] = jnp.zeros_like(acc_ref)

    acc_ref[...] += jnp.dot(a_ref[...], w_ref[...],
                            preferred_element_type=acc_ref.dtype)

    @pl.when(k == pl.num_programs(2) - 1)
    def _():
        o_ref[...] = (acc_ref[...].astype(jnp.float32) * scale_ref[0, 0]
                      + bias_ref[...])


def _vmem_block_bytes(tm, tk, tn, qbytes):
    """Estimated VMEM footprint: double-buffered blocks + accumulator."""
    a = tm * tk * qbytes
    w = tk * tn * qbytes
    b = tn * 4
    o = tm * tn * 4
    acc = tm * tn * 4
    return 2 * (a + w + b + o) + acc


def _pcilt_matmul(a_q, w_q, bias2d, scale, tk, tn, cfg):
    """a_q: (M, K) quantized patches (int8/bf16), w_q: (Kp, OCp) pre-padded
    quantized weights, bias2d: (1, OCp) f32, scale: () f32.
    Returns (Mp, OCp) f32; caller slices the valid region."""
    M, K = a_q.shape
    Kp, OCp = w_q.shape
    qbytes = jnp.dtype(a_q.dtype).itemsize
    acc_dtype = jnp.int32 if a_q.dtype == jnp.int8 else jnp.float32

    k_steps = Kp // tk
    n_steps = OCp // tn

    # M tile: largest that fits the generation-aware VMEM budget, capped at
    # the (128-rounded) problem size.  On v7x prefer >=2 steps in the parallel
    # (i, j) region so both TensorCores get work.
    budget = cfg["vmem_budget"]
    cand = (2048, 1024, 512, 256, 128)
    fits = [t for t in cand if _vmem_block_bytes(t, tk, tn, qbytes) <= budget]
    tm = max(fits) if fits else 128
    tm = min(tm, _round_up(M, 128))
    if cfg["two_cores"] and fits and pl.cdiv(M, tm) * n_steps < 2:
        smaller = [t for t in fits if t <= tm and pl.cdiv(M, t) >= 2]
        if smaller:
            tm = max(smaller)

    Mp = _round_up(M, tm)
    if Mp != M or Kp != K:
        a_q = jnp.pad(a_q, ((0, Mp - M), (0, Kp - K)))

    scale_arr = jnp.asarray(scale, jnp.float32).reshape(1, 1)
    m_steps = Mp // tm

    # Honest HBM traffic under the chosen BlockSpecs (A re-read per j tile,
    # W re-read per i tile, except the fully-resident single-block weight).
    if k_steps == 1:
        a_reads = 1
        w_reads = 1 if n_steps == 1 else m_steps
    else:
        a_reads = n_steps
        w_reads = m_steps
    bytes_accessed = (Mp * Kp * qbytes * a_reads
                      + Kp * OCp * qbytes * w_reads
                      + OCp * 4 + Mp * OCp * 4)
    flops = 2 * Mp * Kp * OCp
    blk_bytes = _vmem_block_bytes(tm, tk, tn, qbytes)
    vmem_limit = int(min(cfg["vmem_cap"], max(16 << 20, 4 * blk_bytes)))

    if k_steps == 1:
        kernel = functools.partial(_pcilt_kernel_noacc, acc_dtype=acc_dtype)
        grid = (m_steps, n_steps)
        in_specs = [
            pl.BlockSpec((1, 1), lambda i, j: (0, 0),
                         memory_space=pltpu.MemorySpace.SMEM),
            pl.BlockSpec((tm, tk), lambda i, j: (i, 0)),
            pl.BlockSpec((tk, tn), lambda i, j: (0, j)),
            pl.BlockSpec((1, tn), lambda i, j: (0, j)),
        ]
        out_specs = pl.BlockSpec((tm, tn), lambda i, j: (i, j))
        scratch = []
        dims = ("parallel", "parallel")
    else:
        kernel = functools.partial(_pcilt_kernel_acc, acc_dtype=acc_dtype)
        grid = (m_steps, n_steps, k_steps)
        in_specs = [
            pl.BlockSpec((1, 1), lambda i, j, k: (0, 0),
                         memory_space=pltpu.MemorySpace.SMEM),
            pl.BlockSpec((tm, tk), lambda i, j, k: (i, k)),
            pl.BlockSpec((tk, tn), lambda i, j, k: (k, j)),
            pl.BlockSpec((1, tn), lambda i, j, k: (0, j)),
        ]
        out_specs = pl.BlockSpec((tm, tn), lambda i, j, k: (i, j))
        scratch = [pltpu.VMEM((tm, tn), acc_dtype)]
        dims = ("parallel", "parallel", "arbitrary")

    out = pl.pallas_call(
        kernel,
        out_shape=jax.ShapeDtypeStruct((Mp, OCp), jnp.float32),
        grid_spec=pltpu.PrefetchScalarGridSpec(
            num_scalar_prefetch=0,
            grid=grid,
            in_specs=in_specs,
            out_specs=out_specs,
            scratch_shapes=scratch,
        ),
        compiler_params=pltpu.CompilerParams(
            dimension_semantics=dims,
            vmem_limit_bytes=vmem_limit,
        ),
        cost_estimate=pl.CostEstimate(
            flops=flops, transcendentals=0, bytes_accessed=bytes_accessed),
    )(scale_arr, a_q, w_q, bias2d)

    return out


# ------------------------------- JAX glue ---------------------------------- #
def _symmetric_quantize(x, bits, store_dtype):
    qmax = float(2 ** (bits - 1) - 1)
    scale = jnp.maximum(jnp.max(jnp.abs(x)), 1e-8) / qmax
    q = jnp.clip(jnp.round(x / scale), -qmax - 1.0, qmax)
    return q.astype(store_dtype), scale.astype(jnp.float32)


def _extract_patches_nchw(x, k, stride, padding):
    """(N, C, H, W) -> (N, OH, OW, C*k*k) patches, feature order (c, kh, kw).

    Dtype-agnostic (works for int8) so the quantized operand never touches a
    wider dtype in HBM.
    """
    N, C, H, W = x.shape
    if padding:
        x = jnp.pad(x, ((0, 0), (0, 0), (padding, padding), (padding, padding)))
    Hp, Wp = H + 2 * padding, W + 2 * padding
    OH = (Hp - k) // stride + 1
    OW = (Wp - k) // stride + 1
    cols = []
    for kh in range(k):
        for kw in range(k):
            sl = lax.slice(
                x, (0, 0, kh, kw),
                (N, C, kh + (OH - 1) * stride + 1, kw + (OW - 1) * stride + 1),
                (1, 1, stride, stride))
            cols.append(sl)                      # (N, C, OH, OW)
    p = jnp.stack(cols, axis=-1)                 # (N, C, OH, OW, k*k)
    p = p.transpose(0, 2, 3, 1, 4)               # (N, OH, OW, C, k*k)
    return p.reshape(N, OH, OW, C * k * k)


class PCILTConv2D:
    """JAX/Pallas port of the PyTorch PCILTConv2D module (NCHW layout)."""

    def __init__(self, in_channels, out_channels, kernel_size,
                 stride=1, padding=0, activation_bits=8, weight_bits=8,
                 key=jax.random.PRNGKey(42)):
        self.in_channels = in_channels
        self.out_channels = out_channels
        self.kernel_size = kernel_size
        self.stride = stride
        self.padding = padding
        self.activation_bits = activation_bits
        self.weight_bits = weight_bits
        self.cfg = _chip_config()

        # Quantized-operand storage dtype: int8 on integer-MXU chips (v5e/v6e),
        # bf16 elsewhere (exact for <=8-bit ints; v7x has no integer MXU).
        if activation_bits <= 8 and weight_bits <= 8:
            self.q_dtype = jnp.int8 if self.cfg["has_int_mxu"] else jnp.bfloat16
        else:
            # TODO(synk): >8-bit quantization falls back to f32 operands.
            self.q_dtype = jnp.float32

        kw_key, b_key = jax.random.split(key)
        fan_in = in_channels * kernel_size * kernel_size
        bound = 1.0 / jnp.sqrt(fan_in)
        # weight: (OC, C, KH, KW) — same layout as torch.nn.Conv2d
        self.weight = jax.random.uniform(
            kw_key, (out_channels, in_channels, kernel_size, kernel_size),
            jnp.float32, -bound, bound)
        self.bias = jax.random.uniform(
            b_key, (out_channels,), jnp.float32, -bound, bound)

        # Pre-quantize weights (the "pre-computed" part of PCILT).
        self.w_q, self.w_scale = _symmetric_quantize(
            self.weight, weight_bits, self.q_dtype)

        # Tile-aware lane padding.  K (=C*KH*KW) and OC are padded so the
        # contraction dim is lane-aligned, the output is lane-dense, and the
        # chosen tk/tn never degrade to 128 for awkward sizes (zero padding is
        # free for the dot product).
        K = fan_in
        self.K = K
        Kp0 = _round_up(K, 128)
        if Kp0 <= 512:
            self.Kp, self.tk = Kp0, Kp0
        else:
            self.Kp = _round_up(K, 256)
            self.tk = 512 if self.Kp % 512 == 0 else 256

        OCp0 = _round_up(out_channels, 128)
        if OCp0 <= 512:
            self.OCp, self.tn = OCp0, OCp0
        else:
            self.OCp = _round_up(out_channels, 256)
            self.tn = 512 if self.OCp % 512 == 0 else 256

        # (OC, C, KH, KW) -> (K, OC) with (c, kh, kw) row ordering, matching
        # _extract_patches_nchw's feature ordering.
        w_mat = self.w_q.reshape(out_channels, K).T
        self.w_q_mat = jnp.pad(
            w_mat, ((0, self.Kp - K), (0, self.OCp - out_channels)))
        self.bias_padded = jnp.pad(
            self.bias, (0, self.OCp - out_channels)
        ).reshape(1, self.OCp).astype(jnp.float32)

    @functools.partial(jax.jit, static_argnums=0)
    def forward(self, x):
        # x: (N, C, H, W) float32
        a_q, a_scale = _symmetric_quantize(x, self.activation_bits, self.q_dtype)

        # TODO(synk): fuse this im2col into the Pallas kernel (row-band halo
        # DMA) to avoid the KH*KW x HBM blowup of materialized patches.
        patches = _extract_patches_nchw(
            a_q, self.kernel_size, self.stride, self.padding)
        N, OH, OW, K = patches.shape
        patches = patches.reshape(N * OH * OW, K)

        scale = a_scale * self.w_scale
        out_mat = _pcilt_matmul(patches, self.w_q_mat, self.bias_padded,
                                scale, self.tk, self.tn, self.cfg)
        out = out_mat[:N * OH * OW, :self.out_channels]
        out = out.reshape(N, OH, OW, self.out_channels)
        return out.transpose(0, 3, 1, 2)  # back to NCHW

    def reference(self, x):
        """Pure-JAX reference (dequantized conv) for verification."""
        a_q, a_scale = _symmetric_quantize(x, self.activation_bits, self.q_dtype)
        x_dq = a_q.astype(jnp.float32) * a_scale
        w_dq = self.w_q.astype(jnp.float32) * self.w_scale
        out = lax.conv_general_dilated(
            x_dq, w_dq,
            window_strides=(self.stride, self.stride),
            padding=[(self.padding, self.padding)] * 2,
            dimension_numbers=("NCHW", "OIHW", "NCHW"),
            precision=lax.Precision.HIGHEST)
        return out + self.bias.reshape(1, -1, 1, 1)


# --------------------------------- main ------------------------------------ #
if __name__ == "__main__":
    key = jax.random.PRNGKey(0)
    x = jax.random.normal(key, (2, 4, 16, 16), jnp.float32)  # NCHW

    conv = PCILTConv2D(in_channels=4, out_channels=8, kernel_size=3,
                       stride=1, padding=1,
                       activation_bits=8, weight_bits=8)

    out = conv.forward(x)
    out = jax.block_until_ready(out)

    ref = jax.block_until_ready(conv.reference(x))
    assert out.shape == (2, 8, 16, 16), out.shape
    assert jnp.allclose(out, ref, atol=1e-4, rtol=1e-4), (
        float(jnp.max(jnp.abs(out - ref))))

    print("KERNEL_OK")
</pallas_src>

<mosaic_0001>
module attributes {stable_mosaic.version = 11 : i64} {
  func.func @_pcilt_kernel_noacc(%arg0: i32, %arg1: i32, %arg2: memref<1x1xf32, #tpu.memory_space<smem>>, %arg3: memref<512x128xbf16, #tpu.memory_space<vmem>>, %arg4: memref<128x128xbf16, #tpu.memory_space<vmem>>, %arg5: memref<1x128xf32, #tpu.memory_space<vmem>>, %arg6: memref<512x128xf32, #tpu.memory_space<vmem>>) attributes {dimension_semantics = [#tpu.dimension_semantics<parallel>, #tpu.dimension_semantics<parallel>], iteration_bounds = array<i64: 1, 1>, scalar_prefetch = 0 : i64, scratch_operands = 0 : i64, tpu.core_type = #tpu.core_type<tc>, window_params = [{transform_indices = @transform_0, window_bounds = array<i64: 1, 1>}, {transform_indices = @transform_1, window_bounds = array<i64: 512, 128>}, {transform_indices = @transform_2, window_bounds = array<i64: 128, 128>}, {transform_indices = @transform_3, window_bounds = array<i64: 1, 128>}, {transform_indices = @transform_4, window_bounds = array<i64: 512, 128>}]} {
    %c0 = arith.constant 0 : index
    %c0_0 = arith.constant 0 : index
    %0 = vector.load %arg3[%c0, %c0_0] : memref<512x128xbf16, #tpu.memory_space<vmem>>, vector<512x128xbf16>
    %c0_1 = arith.constant 0 : index
    %c0_2 = arith.constant 0 : index
    %1 = vector.load %arg4[%c0_1, %c0_2] : memref<128x128xbf16, #tpu.memory_space<vmem>>, vector<128x128xbf16>
    %cst = arith.constant dense<0.000000e+00> : vector<512x128xf32>
    %2 = tpu.matmul %0, %1, %cst {dimension_numbers = #tpu.dot_dimension_numbers<[1], [0], [0], [1], [0, 0, 1, 1], [], []>} : vector<512x128xbf16>, vector<128x128xbf16>, vector<512x128xf32> -> vector<512x128xf32>
    %c0_3 = arith.constant 0 : index
    %c0_4 = arith.constant 0 : index
    %3 = memref.load %arg2[%c0_3, %c0_4] : memref<1x1xf32, #tpu.memory_space<smem>>
    %4 = vector.broadcast %3 : f32 to vector<512x128xf32>
    %5 = arith.mulf %2, %4 : vector<512x128xf32>
    %c0_5 = arith.constant 0 : index
    %c0_6 = arith.constant 0 : index
    %6 = vector.load %arg5[%c0_5, %c0_6] : memref<1x128xf32, #tpu.memory_space<vmem>>, vector<1x128xf32>
    %7 = vector.broadcast %6 : vector<1x128xf32> to vector<512x128xf32>
    %8 = arith.addf %5, %7 : vector<512x128xf32>
    %c0_7 = arith.constant 0 : index
    %c0_8 = arith.constant 0 : index
    %9 = vector.load %arg6[%c0_7, %c0_8] : memref<512x128xf32, #tpu.memory_space<vmem>>, vector<512x128xf32>
    tpu.vector_store %arg6[%c0_7, %c0_8], %8 {strides = array<i32>} : memref<512x128xf32, #tpu.memory_space<vmem>>, vector<512x128xf32>,
    return
  }
  func.func @transform_0(%arg0: i32, %arg1: i32) -> (i32, i32) {
    %c0_i32 = arith.constant 0 : i32
    %c0_i32_0 = arith.constant 0 : i32
    %c0_i32_1 = arith.constant 0 : i32
    return %c0_i32, %c0_i32_0 : i32, i32
  }
  func.func @transform_1(%arg0: i32, %arg1: i32) -> (i32, i32) {
    %c0_i32 = arith.constant 0 : i32
    %c0_i32_0 = arith.constant 0 : i32
    return %arg0, %c0_i32 : i32, i32
  }
  func.func @transform_2(%arg0: i32, %arg1: i32) -> (i32, i32) {
    %c0_i32 = arith.constant 0 : i32
    %c0_i32_0 = arith.constant 0 : i32
    return %c0_i32, %arg1 : i32, i32
  }
  func.func @transform_3(%arg0: i32, %arg1: i32) -> (i32, i32) {
    %c0_i32 = arith.constant 0 : i32
    %c0_i32_0 = arith.constant 0 : i32
    return %c0_i32, %arg1 : i32, i32
  }
  func.func @transform_4(%arg0: i32, %arg1: i32) -> (i32, i32) {
    %c0_i32 = arith.constant 0 : i32
    return %arg0, %arg1 : i32, i32
  }
}

</mosaic_0001>

<llo_original>
// kernel: forward.1
$region0: #{forward.1}
  #allocation0 [shape = 'u32[]', space=smem, size = 0x4, offset = 0x4, fixed_abs, tag = 'smem constant byte address 0x4 - core index']
  #allocation1 [shape = 'u32[72,128]{1,0:T(1,128)}', space=vmem, size = 0x9000, scoped, tag = 'internal scratch']
  #allocation2 [shape = 'f32[1,1]{1,0:T(1,128)S(6)}', space=smem, size = 0x200, scoped, tag = 'scoped memory for forward.1']
  %s0 = inlined_call_operand.<no memory space> [shape: f32[1,1], index: 0, kind: input, shape index: {}]
  %s1 = inlined_call_operand.vmem [shape: bf16[512,128], index: 1, kind: input, shape index: {}]
  %s2 = inlined_call_operand.vmem [shape: bf16[128,128], index: 2, kind: input, shape index: {}]
  %s3 = inlined_call_operand.vmem [shape: f32[1,128], index: 3, kind: input, shape index: {}]
  %s4 = inlined_call_operand.vmem [shape: f32[512,128], index: 4, kind: output, shape index: {}]
  %s5 = sld [smem:[#allocation0]]
  $region26: #{forward.1} parent=0
    _
  %s7 = ssub.s32 1, %s5
  %s8 = scalar_select 0, %s7, %s5
  %9 = sst [smem:[#allocation2]] %s0
  // Predicated region
  $region2: #{forward.1} parent=0 // pred_check
    _
  $region3: #{forward.1} parent=0 // pred_check_branch
    %11 = sbr.rel (0) target = $region5
  $region4: #{forward.1} parent=0 // pred_region
    _
  $region5: #{forward.1} parent=0 // pred_fallthru
    _
  // Predicated region
  $region6: #{forward.1} parent=0 // pred_check
    _
  $region7: #{forward.1} parent=0 // pred_check_branch
    %13 = sbr.rel (0) target = $region9
  $region8: #{forward.1} parent=0 // pred_region
    _
  $region9: #{forward.1} parent=0 // pred_fallthru
    _
  // Predicated region
  $region10: #{forward.1} parent=0 // pred_check
    _
  $region11: #{forward.1} parent=0 // pred_check_branch
    %15 = sbr.rel (0) target = $region13
  $region12: #{forward.1} parent=0 // pred_region
    _
  $region13: #{forward.1} parent=0 // pred_fallthru
    _
  // Predicated region
  $region14: #{forward.1} parent=0 // pred_check
    _
  $region15: #{forward.1} parent=0 // pred_check_branch
    %17 = sbr.rel (0) target = $region17
  $region16: #{forward.1} parent=0 // pred_region
    _
  $region17: #{forward.1} parent=0 // pred_fallthru
    _
  %v18 = vld [vmem:[%s1] sm:$0xf]
  %v19 = vld [vmem:[%s1 + $0x4] sm:$0xf]
  %v20 = vld [vmem:[%s1 + $0x8] sm:$0xf]
  %v21 = vld [vmem:[%s1 + $0xc] sm:$0xf]
  %v22 = vld [vmem:[%s1 + $0x10] sm:$0xf]
  %v23 = vld [vmem:[%s1 + $0x14] sm:$0xf]
  %v24 = vld [vmem:[%s1 + $0x18] sm:$0xf]
  %v25 = vld [vmem:[%s1 + $0x1c] sm:$0xf]
  %v26 = vld [vmem:[%s1 + $0x20] sm:$0xf]
  %v27 = vld [vmem:[%s1 + $0x24] sm:$0xf]
  %v28 = vld [vmem:[%s1 + $0x28] sm:$0xf]
  %v29 = vld [vmem:[%s1 + $0x2c] sm:$0xf]
  %v30 = vld [vmem:[%s1 + $0x30] sm:$0xf]
  %v31 = vld [vmem:[%s1 + $0x34] sm:$0xf]
  %v32 = vld [vmem:[%s1 + $0x38] sm:$0xf]
  %v33 = vld [vmem:[%s1 + $0x3c] sm:$0xf]
  %v34 = vld [vmem:[%s1 + $0x40] sm:$0xf]
  %v35 = vld [vmem:[%s1 + $0x44] sm:$0xf]
  %v36 = vld [vmem:[%s1 + $0x48] sm:$0xf]
  %v37 = vld [vmem:[%s1 + $0x4c] sm:$0xf]
  %v38 = vld [vmem:[%s1 + $0x50] sm:$0xf]
  %v39 = vld [vmem:[%s1 + $0x54] sm:$0xf]
  %v40 = vld [vmem:[%s1 + $0x58] sm:$0xf]
  %v41 = vld [vmem:[%s1 + $0x5c] sm:$0xf]
  %v42 = vld [vmem:[%s1 + $0x60] sm:$0xf]
  %v43 = vld [vmem:[%s1 + $0x64] sm:$0xf]
  %v44 = vld [vmem:[%s1 + $0x68] sm:$0xf]
  %v45 = vld [vmem:[%s1 + $0x6c] sm:$0xf]
  %v46 = vld [vmem:[%s1 + $0x70] sm:$0xf]
  %v47 = vld [vmem:[%s1 + $0x74] sm:$0xf]
  %v48 = vld [vmem:[%s1 + $0x78] sm:$0xf]
  %v49 = vld [vmem:[%s1 + $0x7c] sm:$0xf]
  %v50 = vld [vmem:[%s1 + $0x80] sm:$0xf]
  %v51 = vld [vmem:[%s1 + $0x84] sm:$0xf]
  %v52 = vld [vmem:[%s1 + $0x88] sm:$0xf]
  %v53 = vld [vmem:[%s1 + $0x8c] sm:$0xf]
  %v54 = vld [vmem:[%s1 + $0x90] sm:$0xf]
  %v55 = vld [vmem:[%s1 + $0x94] sm:$0xf]
  %v56 = vld [vmem:[%s1 + $0x98] sm:$0xf]
  %v57 = vld [vmem:[%s1 + $0x9c] sm:$0xf]
  %v58 = vld [vmem:[%s1 + $0xa0] sm:$0xf]
  %v59 = vld [vmem:[%s1 + $0xa4] sm:$0xf]
  %v60 = vld [vmem:[%s1 + $0xa8] sm:$0xf]
  %v61 = vld [vmem:[%s1 + $0xac] sm:$0xf]
  %v62 = vld [vmem:[%s1 + $0xb0] sm:$0xf]
  %v63 = vld [vmem:[%s1 + $0xb4] sm:$0xf]
  %v64 = vld [vmem:[%s1 + $0xb8] sm:$0xf]
  %v65 = vld [vmem:[%s1 + $0xbc] sm:$0xf]
  %v66 = vld [vmem:[%s1 + $0xc0] sm:$0xf]
  %v67 = vld [vmem:[%s1 + $0xc4] sm:$0xf]
  %v68 = vld [vmem:[%s1 + $0xc8] sm:$0xf]
  %v69 = vld [vmem:[%s1 + $0xcc] sm:$0xf]
  %v70 = vld [vmem:[%s1 + $0xd0] sm:$0xf]
  %v71 = vld [vmem:[%s1 + $0xd4] sm:$0xf]
  %v72 = vld [vmem:[%s1 + $0xd8] sm:$0xf]
  %v73 = vld [vmem:[%s1 + $0xdc] sm:$0xf]
  %v74 = vld [vmem:[%s1 + $0xe0] sm:$0xf]
  %v75 = vld [vmem:[%s1 + $0xe4] sm:$0xf]
  %v76 = vld [vmem:[%s1 + $0xe8] sm:$0xf]
  %v77 = vld [vmem:[%s1 + $0xec] sm:$0xf]
  %v78 = vld [vmem:[%s1 + $0xf0] sm:$0xf]
  %v79 = vld [vmem:[%s1 + $0xf4] sm:$0xf]
  %v80 = vld [vmem:[%s1 + $0xf8] sm:$0xf]
  %v81 = vld [vmem:[%s1 + $0xfc] sm:$0xf]
  %v82 = vld [vmem:[%s2] sm:$0xf]
  %v83 = vld [vmem:[%s2 + $0x4] sm:$0xf]
  %v84 = vld [vmem:[%s2 + $0x8] sm:$0xf]
  %v85 = vld [vmem:[%s2 + $0xc] sm:$0xf]
  %v86 = vld [vmem:[%s2 + $0x10] sm:$0xf]
  %v87 = vld [vmem:[%s2 + $0x14] sm:$0xf]
  %v88 = vld [vmem:[%s2 + $0x18] sm:$0xf]
  %v89 = vld [vmem:[%s2 + $0x1c] sm:$0xf]
  %v90 = vld [vmem:[%s2 + $0x20] sm:$0xf]
  %v91 = vld [vmem:[%s2 + $0x24] sm:$0xf]
  %v92 = vld [vmem:[%s2 + $0x28] sm:$0xf]
  %v93 = vld [vmem:[%s2 + $0x2c] sm:$0xf]
  %v94 = vld [vmem:[%s2 + $0x30] sm:$0xf]
  %v95 = vld [vmem:[%s2 + $0x34] sm:$0xf]
  %v96 = vld [vmem:[%s2 + $0x38] sm:$0xf]
  %v97 = vld [vmem:[%s2 + $0x3c] sm:$0xf]
  %v162 = vunpack.c.l.b16 %v18
  %v163 = vunpack.c.l.b16 %v19
  %v164 = vunpack.c.l.b16 %v20
  %v165 = vunpack.c.l.b16 %v21
  %v166 = vunpack.c.l.b16 %v22
  %v167 = vunpack.c.l.b16 %v23
  %v168 = vunpack.c.l.b16 %v24
  %v169 = vunpack.c.l.b16 %v25
  %v170 = vunpack.c.l.b16 %v26
  %v171 = vunpack.c.l.b16 %v27
  %v172 = vunpack.c.l.b16 %v28
  %v173 = vunpack.c.l.b16 %v29
  %v174 = vunpack.c.l.b16 %v30
  %v175 = vunpack.c.l.b16 %v31
  %v176 = vunpack.c.l.b16 %v32
  %v177 = vunpack.c.l.b16 %v33
  %v178 = vunpack.c.l.b16 %v34
  %v179 = vunpack.c.l.b16 %v35
  %v180 = vunpack.c.l.b16 %v36
  %v181 = vunpack.c.l.b16 %v37
  %v182 = vunpack.c.l.b16 %v38
  %v183 = vunpack.c.l.b16 %v39
  %v184 = vunpack.c.l.b16 %v40
  %v185 = vunpack.c.l.b16 %v41
  %v186 = vunpack.c.l.b16 %v42
  %v187 = vunpack.c.l.b16 %v43
  %v188 = vunpack.c.l.b16 %v44
  %v189 = vunpack.c.l.b16 %v45
  %v190 = vunpack.c.l.b16 %v46
  %v191 = vunpack.c.l.b16 %v47
  %v192 = vunpack.c.l.b16 %v48
  %v193 = vunpack.c.l.b16 %v49
  %v194 = vunpack.c.l.b16 %v50
  %v195 = vunpack.c.l.b16 %v51
  %v196 = vunpack.c.l.b16 %v52
  %v197 = vunpack.c.l.b16 %v53
  %v198 = vunpack.c.l.b16 %v54
  %v199 = vunpack.c.l.b16 %v55
  %v200 = vunpack.c.l.b16 %v56
  %v201 = vunpack.c.l.b16 %v57
  %v202 = vunpack.c.l.b16 %v58
  %v203 = vunpack.c.l.b16 %v59
  %v204 = vunpack.c.l.b16 %v60
  %v205 = vunpack.c.l.b16 %v61
  %v206 = vunpack.c.l.b16 %v62
  %v207 = vunpack.c.l.b16 %v63
  %v208 = vunpack.c.l.b16 %v64
  %v209 = vunpack.c.l.b16 %v65
  %v210 = vunpack.c.l.b16 %v66
  %v211 = vunpack.c.l.b16 %v67
  %v212 = vunpack.c.l.b16 %v68
  %v213 = vunpack.c.l.b16 %v69
  %v214 = vunpack.c.l.b16 %v70
  %v215 = vunpack.c.l.b16 %v71
  %v216 = vunpack.c.l.b16 %v72
  %v217 = vunpack.c.l.b16 %v73
  %v218 = vunpack.c.l.b16 %v74
  %v219 = vunpack.c.l.b16 %v75
  %v220 = vunpack.c.l.b16 %v76
  %v221 = vunpack.c.l.b16 %v77
  %v222 = vunpack.c.l.b16 %v78
  %v223 = vunpack.c.l.b16 %v79
  %v224 = vunpack.c.l.b16 %v80
  %v225 = vunpack.c.l.b16 %v81
  %v226 = vpack.c.b16 %v163, %v162
  %v227 = vpack.c.b16 %v165, %v164
  %v228 = vpack.c.b16 %v167, %v166
  %v229 = vpack.c.b16 %v169, %v168
  %v230 = vpack.c.b16 %v171, %v170
  %v231 = vpack.c.b16 %v173, %v172
  %v232 = vpack.c.b16 %v175, %v174
  %v233 = vpack.c.b16 %v177, %v176
  %v234 = vpack.c.b16 %v179, %v178
  %v235 = vpack.c.b16 %v181, %v180
  %v236 = vpack.c.b16 %v183, %v182
  %v237 = vpack.c.b16 %v185, %v184
  %v238 = vpack.c.b16 %v187, %v186
  %v239 = vpack.c.b16 %v189, %v188
  %v240 = vpack.c.b16 %v191, %v190
  %v241 = vpack.c.b16 %v193, %v192
  %v242 = vpack.c.b16 %v195, %v194
  %v243 = vpack.c.b16 %v197, %v196
  %v244 = vpack.c.b16 %v199, %v198
  %v245 = vpack.c.b16 %v201, %v200
  %v246 = vpack.c.b16 %v203, %v202
  %v247 = vpack.c.b16 %v205, %v204
  %v248 = vpack.c.b16 %v207, %v206
  %v249 = vpack.c.b16 %v209, %v208
  %v250 = vpack.c.b16 %v211, %v210
  %v251 = vpack.c.b16 %v213, %v212
  %v252 = vpack.c.b16 %v215, %v214
  %v253 = vpack.c.b16 %v217, %v216
  %v254 = vpack.c.b16 %v219, %v218
  %v255 = vpack.c.b16 %v221, %v220
  %v256 = vpack.c.b16 %v223, %v222
  %v257 = vpack.c.b16 %v225, %v224
  %v306 = vunpack.c.l.b16 %v82
  %v307 = vunpack.c.l.b16 %v83
  %v308 = vunpack.c.l.b16 %v84
  %v309 = vunpack.c.l.b16 %v85
  %v310 = vunpack.c.l.b16 %v86
  %v311 = vunpack.c.l.b16 %v87
  %v312 = vunpack.c.l.b16 %v88
  %v313 = vunpack.c.l.b16 %v89
  %v314 = vunpack.c.l.b16 %v90
  %v315 = vunpack.c.l.b16 %v91
  %v316 = vunpack.c.l.b16 %v92
  %v317 = vunpack.c.l.b16 %v93
  %v318 = vunpack.c.l.b16 %v94
  %v319 = vunpack.c.l.b16 %v95
  %v320 = vunpack.c.l.b16 %v96
  %v321 = vunpack.c.l.b16 %v97
  %v322 = vpack.c.b16 %v307, %v306
  %v323 = vpack.c.b16 %v309, %v308
  %v324 = vpack.c.b16 %v311, %v310
  %v325 = vpack.c.b16 %v313, %v312
  %v326 = vpack.c.b16 %v315, %v314
  %v327 = vpack.c.b16 %v317, %v316
  %v328 = vpack.c.b16 %v319, %v318
  %v329 = vpack.c.b16 %v321, %v320
  %338 = vmatpush.bf16.msra.mxu0 %v329
  %339 = vmatpush.bf16.msra.mxu0 %v328
  %340 = vmatpush.bf16.msra.mxu0 %v327
  %341 = vmatpush.bf16.msra.mxu0 %v326
  %342 = vmatpush.bf16.msra.mxu0 %v325
  %343 = vmatpush.bf16.msra.mxu0 %v324
  %344 = vmatpush.bf16.msra.mxu0 %v323
  %345 = vmatpush.bf16.msra.mxu0 %v322
  %346 = vmatmul.bf16.gmra.mxu0 %v226
  %v347 = vpop.f32.mrf.mxu0
  %v348 = vadd.f32 0.0, %v347
  %v349 = vpop.f32.mrf.mxu0
  %v350 = vadd.f32 0.0, %v349
  %351 = vmatmul.bf16.gmra.mxu0 %v227
  %v352 = vpop.f32.mrf.mxu0
  %v353 = vadd.f32 0.0, %v352
  %v354 = vpop.f32.mrf.mxu0
  %v355 = vadd.f32 0.0, %v354
  %356 = vmatmul.bf16.gmra.mxu0 %v228
  %v357 = vpop.f32.mrf.mxu0
  %v358 = vadd.f32 0.0, %v357
  %v359 = vpop.f32.mrf.mxu0
  %v360 = vadd.f32 0.0, %v359
  %361 = vmatmul.bf16.gmra.mxu0 %v229
  %v362 = vpop.f32.mrf.mxu0
  %v363 = vadd.f32 0.0, %v362
  %v364 = vpop.f32.mrf.mxu0
  %v365 = vadd.f32 0.0, %v364
  %366 = vmatmul.bf16.gmra.mxu0 %v230
  %v367 = vpop.f32.mrf.mxu0
  %v368 = vadd.f32 0.0, %v367
  %v369 = vpop.f32.mrf.mxu0
  %v370 = vadd.f32 0.0, %v369
  %371 = vmatmul.bf16.gmra.mxu0 %v231
  %v372 = vpop.f32.mrf.mxu0
  %v373 = vadd.f32 0.0, %v372
  %v374 = vpop.f32.mrf.mxu0
  %v375 = vadd.f32 0.0, %v374
  %376 = vmatmul.bf16.gmra.mxu0 %v232
  %v377 = vpop.f32.mrf.mxu0
  %v378 = vadd.f32 0.0, %v377
  %v379 = vpop.f32.mrf.mxu0
  %v380 = vadd.f32 0.0, %v379
  %381 = vmatmul.bf16.gmra.mxu0 %v233
  %v382 = vpop.f32.mrf.mxu0
  %v383 = vadd.f32 0.0, %v382
  %v384 = vpop.f32.mrf.mxu0
  %v385 = vadd.f32 0.0, %v384
  %386 = vmatmul.bf16.gmra.mxu0 %v234
  %v387 = vpop.f32.mrf.mxu0
  %v388 = vadd.f32 0.0, %v387
  %v389 = vpop.f32.mrf.mxu0
  %v390 = vadd.f32 0.0, %v389
  %391 = vmatmul.bf16.gmra.mxu0 %v235
  %v392 = vpop.f32.mrf.mxu0
  %v393 = vadd.f32 0.0, %v392
  %v394 = vpop.f32.mrf.mxu0
  %v395 = vadd.f32 0.0, %v394
  %396 = vmatmul.bf16.gmra.mxu0 %v236
  %v397 = vpop.f32.mrf.mxu0
  %v398 = vadd.f32 0.0, %v397
  %v399 = vpop.f32.mrf.mxu0
  %v400 = vadd.f32 0.0, %v399
  %401 = vmatmul.bf16.gmra.mxu0 %v237
  %v402 = vpop.f32.mrf.mxu0
  %v403 = vadd.f32 0.0, %v402
  %v404 = vpop.f32.mrf.mxu0
  %v405 = vadd.f32 0.0, %v404
  %406 = vmatmul.bf16.gmra.mxu0 %v238
  %v407 = vpop.f32.mrf.mxu0
  %v408 = vadd.f32 0.0, %v407
  %v409 = vpop.f32.mrf.mxu0
  %v410 = vadd.f32 0.0, %v409
  %411 = vmatmul.bf16.gmra.mxu0 %v239
  %v412 = vpop.f32.mrf.mxu0
  %v413 = vadd.f32 0.0, %v412
  %v414 = vpop.f32.mrf.mxu0
  %v415 = vadd.f32 0.0, %v414
  %416 = vmatmul.bf16.gmra.mxu0 %v240
  %v417 = vpop.f32.mrf.mxu0
  %v418 = vadd.f32 0.0, %v417
  %v419 = vpop.f32.mrf.mxu0
  %v420 = vadd.f32 0.0, %v419
  %421 = vmatmul.bf16.gmra.mxu0 %v241
  %v422 = vpop.f32.mrf.mxu0
  %v423 = vadd.f32 0.0, %v422
  %v424 = vpop.f32.mrf.mxu0
  %v425 = vadd.f32 0.0, %v424
  %426 = vmatmul.bf16.gmra.mxu0 %v242
  %v427 = vpop.f32.mrf.mxu0
  %v428 = vadd.f32 0.0, %v427
  %v429 = vpop.f32.mrf.mxu0
  %v430 = vadd.f32 0.0, %v429
  %431 = vmatmul.bf16.gmra.mxu0 %v243
  %v432 = vpop.f32.mrf.mxu0
  %v433 = vadd.f32 0.0, %v432
  %v434 = vpop.f32.mrf.mxu0
  %v435 = vadd.f32 0.0, %v434
  %436 = vmatmul.bf16.gmra.mxu0 %v244
  %v437 = vpop.f32.mrf.mxu0
  %v438 = vadd.f32 0.0, %v437
  %v439 = vpop.f32.mrf.mxu0
  %v440 = vadd.f32 0.0, %v439
  %441 = vmatmul.bf16.gmra.mxu0 %v245
  %v442 = vpop.f32.mrf.mxu0
  %v443 = vadd.f32 0.0, %v442
  %v444 = vpop.f32.mrf.mxu0
  %v445 = vadd.f32 0.0, %v444
  %446 = vmatmul.bf16.gmra.mxu0 %v246
  %v447 = vpop.f32.mrf.mxu0
  %v448 = vadd.f32 0.0, %v447
  %v449 = vpop.f32.mrf.mxu0
  %v450 = vadd.f32 0.0, %v449
  %451 = vmatmul.bf16.gmra.mxu0 %v247
  %v452 = vpop.f32.mrf.mxu0
  %v453 = vadd.f32 0.0, %v452
  %v454 = vpop.f32.mrf.mxu0
  %v455 = vadd.f32 0.0, %v454
  %456 = vmatmul.bf16.gmra.mxu0 %v248
  %v457 = vpop.f32.mrf.mxu0
  %v458 = vadd.f32 0.0, %v457
  %v459 = vpop.f32.mrf.mxu0
  %v460 = vadd.f32 0.0, %v459
  %461 = vmatmul.bf16.gmra.mxu0 %v249
  %v462 = vpop.f32.mrf.mxu0
  %v463 = vadd.f32 0.0, %v462
  %v464 = vpop.f32.mrf.mxu0
  %v465 = vadd.f32 0.0, %v464
  %466 = vmatmul.bf16.gmra.mxu0 %v250
  %v467 = vpop.f32.mrf.mxu0
  %v468 = vadd.f32 0.0, %v467
  %v469 = vpop.f32.mrf.mxu0
  %v470 = vadd.f32 0.0, %v469
  %471 = vmatmul.bf16.gmra.mxu0 %v251
  %v472 = vpop.f32.mrf.mxu0
  %v473 = vadd.f32 0.0, %v472
  %v474 = vpop.f32.mrf.mxu0
  %v475 = vadd.f32 0.0, %v474
  %476 = vmatmul.bf16.gmra.mxu0 %v252
  %v477 = vpop.f32.mrf.mxu0
  %v478 = vadd.f32 0.0, %v477
  %v479 = vpop.f32.mrf.mxu0
  %v480 = vadd.f32 0.0, %v479
  %481 = vmatmul.bf16.gmra.mxu0 %v253
  %v482 = vpop.f32.mrf.mxu0
  %v483 = vadd.f32 0.0, %v482
  %v484 = vpop.f32.mrf.mxu0
  %v485 = vadd.f32 0.0, %v484
  %486 = vmatmul.bf16.gmra.mxu0 %v254
  %v487 = vpop.f32.mrf.mxu0
  %v488 = vadd.f32 0.0, %v487
  %v489 = vpop.f32.mrf.mxu0
  %v490 = vadd.f32 0.0, %v489
  %491 = vmatmul.bf16.gmra.mxu0 %v255
  %v492 = vpop.f32.mrf.mxu0
  %v493 = vadd.f32 0.0, %v492
  %v494 = vpop.f32.mrf.mxu0
  %v495 = vadd.f32 0.0, %v494
  %496 = vmatmul.bf16.gmra.mxu0 %v256
  %v497 = vpop.f32.mrf.mxu0
  %v498 = vadd.f32 0.0, %v497
  %v499 = vpop.f32.mrf.mxu0
  %v500 = vadd.f32 0.0, %v499
  %501 = vmatmul.bf16.gmra.mxu0 %v257
  %v502 = vpop.f32.mrf.mxu0
  %v503 = vadd.f32 0.0, %v502
  %v504 = vpop.f32.mrf.mxu0
  %v505 = vadd.f32 0.0, %v504
  %506 = vdwg.mxu0
  %s507 = sld [smem:[#allocation2]]
  %v508 = vstv %s507
  %v509 = vmul.f32 %v348, %v508
  %v510 = vmul.f32 %v350, %v508
  %v511 = vmul.f32 %v353, %v508
  %v512 = vmul.f32 %v355, %v508
  %v513 = vmul.f32 %v358, %v508
  %v514 = vmul.f32 %v360, %v508
  %v515 = vmul.f32 %v363, %v508
  %v516 = vmul.f32 %v365, %v508
  %v517 = vmul.f32 %v368, %v508
  %v518 = vmul.f32 %v370, %v508
  %v519 = vmul.f32 %v373, %v508
  %v520 = vmul.f32 %v375, %v508
  %v521 = vmul.f32 %v378, %v508
  %v522 = vmul.f32 %v380, %v508
  %v523 = vmul.f32 %v383, %v508
  %v524 = vmul.f32 %v385, %v508
  %v525 = vmul.f32 %v388, %v508
  %v526 = vmul.f32 %v390, %v508
  %v527 = vmul.f32 %v393, %v508
  %v528 = vmul.f32 %v395, %v508
  %v529 = vmul.f32 %v398, %v508
  %v530 = vmul.f32 %v400, %v508
  %v531 = vmul.f32 %v403, %v508
  %v532 = vmul.f32 %v405, %v508
  %v533 = vmul.f32 %v408, %v508
  %v534 = vmul.f32 %v410, %v508
  %v535 = vmul.f32 %v413, %v508
  %v536 = vmul.f32 %v415, %v508
  %v537 = vmul.f32 %v418, %v508
  %v538 = vmul.f32 %v420, %v508
  %v539 = vmul.f32 %v423, %v508
  %v540 = vmul.f32 %v425, %v508
  %v541 = vmul.f32 %v428, %v508
  %v542 = vmul.f32 %v430, %v508
  %v543 = vmul.f32 %v433, %v508
  %v544 = vmul.f32 %v435, %v508
  %v545 = vmul.f32 %v438, %v508
  %v546 = vmul.f32 %v440, %v508
  %v547 = vmul.f32 %v443, %v508
  %v548 = vmul.f32 %v445, %v508
  %v549 = vmul.f32 %v448, %v508
  %v550 = vmul.f32 %v450, %v508
  %v551 = vmul.f32 %v453, %v508
  %v552 = vmul.f32 %v455, %v508
  %v553 = vmul.f32 %v458, %v508
  %v554 = vmul.f32 %v460, %v508
  %v555 = vmul.f32 %v463, %v508
  %v556 = vmul.f32 %v465, %v508
  %v557 = vmul.f32 %v468, %v508
  %v558 = vmul.f32 %v470, %v508
  %v559 = vmul.f32 %v473, %v508
  %v560 = vmul.f32 %v475, %v508
  %v561 = vmul.f32 %v478, %v508
  %v562 = vmul.f32 %v480, %v508
  %v563 = vmul.f32 %v483, %v508
  %v564 = vmul.f32 %v485, %v508
  %v565 = vmul.f32 %v488, %v508
  %v566 = vmul.f32 %v490, %v508
  %v567 = vmul.f32 %v493, %v508
  %v568 = vmul.f32 %v495, %v508
  %v569 = vmul.f32 %v498, %v508
  %v570 = vmul.f32 %v500, %v508
  %v571 = vmul.f32 %v503, %v508
  %v572 = vmul.f32 %v505, %v508
  %v573 = vld [vmem:[%s3] sm:$0x1]
  %v575 = vperm.slane %v573, 0
  %v577 = vadd.f32 %v509, %v575
  %v578 = vadd.f32 %v510, %v575
  %v579 = vadd.f32 %v511, %v575
  %v580 = vadd.f32 %v512, %v575
  %v581 = vadd.f32 %v513, %v575
  %v582 = vadd.f32 %v514, %v575
  %v583 = vadd.f32 %v515, %v575
  %v584 = vadd.f32 %v516, %v575
  %v585 = vadd.f32 %v517, %v575
  %v586 = vadd.f32 %v518, %v575
  %v587 = vadd.f32 %v519, %v575
  %v588 = vadd.f32 %v520, %v575
  %v589 = vadd.f32 %v521, %v575
  %v590 = vadd.f32 %v522, %v575
  %v591 = vadd.f32 %v523, %v575
  %v592 = vadd.f32 %v524, %v575
  %v593 = vadd.f32 %v525, %v575
  %v594 = vadd.f32 %v526, %v575
  %v595 = vadd.f32 %v527, %v575
  %v596 = vadd.f32 %v528, %v575
  %v597 = vadd.f32 %v529, %v575
  %v598 = vadd.f32 %v530, %v575
  %v599 = vadd.f32 %v531, %v575
  %v600 = vadd.f32 %v532, %v575
  %v601 = vadd.f32 %v533, %v575
  %v602 = vadd.f32 %v534, %v575
  %v603 = vadd.f32 %v535, %v575
  %v604 = vadd.f32 %v536, %v575
  %v605 = vadd.f32 %v537, %v575
  %v606 = vadd.f32 %v538, %v575
  %v607 = vadd.f32 %v539, %v575
  %v608 = vadd.f32 %v540, %v575
  %v609 = vadd.f32 %v541, %v575
  %v610 = vadd.f32 %v542, %v575
  %v611 = vadd.f32 %v543, %v575
  %v612 = vadd.f32 %v544, %v575
  %v613 = vadd.f32 %v545, %v575
  %v614 = vadd.f32 %v546, %v575
  %v615 = vadd.f32 %v547, %v575
  %v616 = vadd.f32 %v548, %v575
  %v617 = vadd.f32 %v549, %v575
  %v618 = vadd.f32 %v550, %v575
  %v619 = vadd.f32 %v551, %v575
  %v620 = vadd.f32 %v552, %v575
  %v621 = vadd.f32 %v553, %v575
  %v622 = vadd.f32 %v554, %v575
  %v623 = vadd.f32 %v555, %v575
  %v624 = vadd.f32 %v556, %v575
  %v625 = vadd.f32 %v557, %v575
  %v626 = vadd.f32 %v558, %v575
  %v627 = vadd.f32 %v559, %v575
  %v628 = vadd.f32 %v560, %v575
  %v629 = vadd.f32 %v561, %v575
  %v630 = vadd.f32 %v562, %v575
  %v631 = vadd.f32 %v563, %v575
  %v632 = vadd.f32 %v564, %v575
  %v633 = vadd.f32 %v565, %v575
  %v634 = vadd.f32 %v566, %v575
  %v635 = vadd.f32 %v567, %v575
  %v636 = vadd.f32 %v568, %v575
  %v637 = vadd.f32 %v569, %v575
  %v638 = vadd.f32 %v570, %v575
  %v639 = vadd.f32 %v571, %v575
  %v640 = vadd.f32 %v572, %v575
  %641 = vst [vmem:[%s4] sm:$0xff] %v577
  %642 = vst [vmem:[%s4 + $0x8] sm:$0xff] %v578
  %643 = vst [vmem:[%s4 + $0x10] sm:$0xff] %v579
  %644 = vst [vmem:[%s4 + $0x18] sm:$0xff] %v580
  %645 = vst [vmem:[%s4 + $0x20] sm:$0xff] %v581
  %646 = vst [vmem:[%s4 + $0x28] sm:$0xff] %v582
  %647 = vst [vmem:[%s4 + $0x30] sm:$0xff] %v583
  %648 = vst [vmem:[%s4 + $0x38] sm:$0xff] %v584
  %649 = vst [vmem:[%s4 + $0x40] sm:$0xff] %v585
  %650 = vst [vmem:[%s4 + $0x48] sm:$0xff] %v586
  %651 = vst [vmem:[%s4 + $0x50] sm:$0xff] %v587
  %652 = vst [vmem:[%s4 + $0x58] sm:$0xff] %v588
  %653 = vst [vmem:[%s4 + $0x60] sm:$0xff] %v589
  %654 = vst [vmem:[%s4 + $0x68] sm:$0xff] %v590
  %655 = vst [vmem:[%s4 + $0x70] sm:$0xff] %v591
  %656 = vst [vmem:[%s4 + $0x78] sm:$0xff] %v592
  %657 = vst [vmem:[%s4 + $0x80] sm:$0xff] %v593
  %658 = vst [vmem:[%s4 + $0x88] sm:$0xff] %v594
  %659 = vst [vmem:[%s4 + $0x90] sm:$0xff] %v595
  %660 = vst [vmem:[%s4 + $0x98] sm:$0xff] %v596
  %661 = vst [vmem:[%s4 + $0xa0] sm:$0xff] %v597
  %662 = vst [vmem:[%s4 + $0xa8] sm:$0xff] %v598
  %663 = vst [vmem:[%s4 + $0xb0] sm:$0xff] %v599
  %664 = vst [vmem:[%s4 + $0xb8] sm:$0xff] %v600
  %665 = vst [vmem:[%s4 + $0xc0] sm:$0xff] %v601
  %666 = vst [vmem:[%s4 + $0xc8] sm:$0xff] %v602
  %667 = vst [vmem:[%s4 + $0xd0] sm:$0xff] %v603
  %668 = vst [vmem:[%s4 + $0xd8] sm:$0xff] %v604
  %669 = vst [vmem:[%s4 + $0xe0] sm:$0xff] %v605
  %670 = vst [vmem:[%s4 + $0xe8] sm:$0xff] %v606
  %671 = vst [vmem:[%s4 + $0xf0] sm:$0xff] %v607
  %672 = vst [vmem:[%s4 + $0xf8] sm:$0xff] %v608
  %673 = vst [vmem:[%s4 + $0x100] sm:$0xff] %v609
  %674 = vst [vmem:[%s4 + $0x108] sm:$0xff] %v610
  %675 = vst [vmem:[%s4 + $0x110] sm:$0xff] %v611
  %676 = vst [vmem:[%s4 + $0x118] sm:$0xff] %v612
  %677 = vst [vmem:[%s4 + $0x120] sm:$0xff] %v613
  %678 = vst [vmem:[%s4 + $0x128] sm:$0xff] %v614
  %679 = vst [vmem:[%s4 + $0x130] sm:$0xff] %v615
  %680 = vst [vmem:[%s4 + $0x138] sm:$0xff] %v616
  %681 = vst [vmem:[%s4 + $0x140] sm:$0xff] %v617
  %682 = vst [vmem:[%s4 + $0x148] sm:$0xff] %v618
  %683 = vst [vmem:[%s4 + $0x150] sm:$0xff] %v619
  %684 = vst [vmem:[%s4 + $0x158] sm:$0xff] %v620
  %685 = vst [vmem:[%s4 + $0x160] sm:$0xff] %v621
  %686 = vst [vmem:[%s4 + $0x168] sm:$0xff] %v622
  %687 = vst [vmem:[%s4 + $0x170] sm:$0xff] %v623
  %688 = vst [vmem:[%s4 + $0x178] sm:$0xff] %v624
  %689 = vst [vmem:[%s4 + $0x180] sm:$0xff] %v625
  %690 = vst [vmem:[%s4 + $0x188] sm:$0xff] %v626
  %691 = vst [vmem:[%s4 + $0x190] sm:$0xff] %v627
  %692 = vst [vmem:[%s4 + $0x198] sm:$0xff] %v628
  %693 = vst [vmem:[%s4 + $0x1a0] sm:$0xff] %v629
  %694 = vst [vmem:[%s4 + $0x1a8] sm:$0xff] %v630
  %695 = vst [vmem:[%s4 + $0x1b0] sm:$0xff] %v631
  %696 = vst [vmem:[%s4 + $0x1b8] sm:$0xff] %v632
  %697 = vst [vmem:[%s4 + $0x1c0] sm:$0xff] %v633
  %698 = vst [vmem:[%s4 + $0x1c8] sm:$0xff] %v634
  %699 = vst [vmem:[%s4 + $0x1d0] sm:$0xff] %v635
  %700 = vst [vmem:[%s4 + $0x1d8] sm:$0xff] %v636
  %701 = vst [vmem:[%s4 + $0x1e0] sm:$0xff] %v637
  %702 = vst [vmem:[%s4 + $0x1e8] sm:$0xff] %v638
  %703 = vst [vmem:[%s4 + $0x1f0] sm:$0xff] %v639
  %704 = vst [vmem:[%s4 + $0x1f8] sm:$0xff] %v640
  // Predicated region
  $region18: #{forward.1} parent=0 // pred_check
    _
  $region19: #{forward.1} parent=0 // pred_check_branch
    %706 = sbr.rel (0) target = $region21
  $region20: #{forward.1} parent=0 // pred_region
    _
  $region21: #{forward.1} parent=0 // pred_fallthru
    _
  // Predicated region
  $region22: #{forward.1} parent=0 // pred_check
    _
  $region23: #{forward.1} parent=0 // pred_check_branch
    %708 = sbr.rel (0) target = $region25
  $region24: #{forward.1} parent=0 // pred_region
    _
  $region25: #{forward.1} parent=0 // pred_fallthru
    _

</llo_original>
